<compile_context>
chip_gen: v5e
topology: v5e:2x2
jax: 0.10.0
libtpu: 0.0.40
codegen_flags: <defaults>
</compile_context>

<pallas_src>
import jax
import jax.numpy as jnp
import numpy as np
from jax import lax
from jax.experimental import pallas as pl
from jax.experimental.pallas import tpu as pltpu


def _default_exp_dtype():
    """bf16 exp on chips with a bf16 EUP/VPU (v6e / v7x); f32 elsewhere (v5e-)."""
    try:
        kind = jax.devices()[0].device_kind.lower()
    except Exception:
        return jnp.float32
    if ("v6" in kind) or ("v7" in kind) or ("7x" in kind):
        return jnp.bfloat16
    return jnp.float32


def make_attention_kernel(heads, dim_head, hw, tq, exp_dtype):
    hidden = heads * dim_head

    def kernel(x_ref, wqkv_ref, wout_ref, bout_ref, o_ref, qkv_ref, acc_ref):
        # x_ref:    (1, C, HW)       current batch element, channels-first (full HW for K/V)
        # wqkv_ref: (3*hidden, C)    fused qkv 1x1-conv weight (q rows pre-scaled), bf16
        # wout_ref: (C, hidden)      output 1x1-conv weight, bf16
        # bout_ref: (C, 1)           output 1x1-conv bias, f32
        # o_ref:    (1, C, TQ)       output block for this query tile (lane-dense)
        # qkv_ref:  (3*hidden, HW)   bf16 VMEM scratch holding the fused projection
        # acc_ref:  (hidden, TQ)     bf16 VMEM scratch holding normalized head outputs
        q_off = pl.multiple_of(pl.program_id(1) * tq, tq)

        xb = x_ref[0].astype(jnp.bfloat16)                              # (C, HW)

        # fused qkv projection (the 1x1 conv), channels-first, stored once in VMEM
        qkv_ref[...] = jnp.dot(
            wqkv_ref[...], xb, preferred_element_type=jnp.float32
        ).astype(jnp.bfloat16)                                          # (3*hidden, HW)

        ones_row = jnp.ones((1, hw), jnp.bfloat16)                      # hoisted

        def head_body(h, carry):
            rq = pl.multiple_of(h * dim_head, dim_head)
            rk = pl.multiple_of(hidden + h * dim_head, dim_head)
            rv = pl.multiple_of(2 * hidden + h * dim_head, dim_head)

            qh = qkv_ref[pl.ds(rq, dim_head), pl.ds(q_off, tq)]         # (dh, TQ), scale folded in
            kh = qkv_ref[pl.ds(rk, dim_head), :]                        # (dh, HW)
            vh = qkv_ref[pl.ds(rv, dim_head), :]                        # (dh, HW)

            # sim_T[j, i] = sum_d k[d, j] * q[d, i]; contraction over dim 0 of both
            # operands lets the MXU consume K transposed (no explicit XLU transpose).
            sim_t = lax.dot_general(
                kh, qh, (((0,), (0,)), ((), ())),
                preferred_element_type=jnp.float32)                     # (HW_j, TQ_i)

            # numerically-stable softmax over j; normalization deferred past P@V
            m = jnp.max(sim_t, axis=0, keepdims=True)                   # (1, TQ)
            e = jnp.exp((sim_t - m).astype(exp_dtype)).astype(jnp.bfloat16)

            # one MXU call gives both out_h and the f32 row-sum (ones row in V):
            #   ov[d, i]  = sum_j v[d, j] * e[j, i]   for d < dh
            #   ov[dh, i] = sum_j e[j, i]             (softmax denominator, f32 acc)
            v_aug = jnp.concatenate([vh, ones_row], axis=0)             # (dh+1, HW)
            ov = jnp.dot(v_aug, e, preferred_element_type=jnp.float32)  # (dh+1, TQ)

            inv_l = pl.reciprocal(ov[dim_head:dim_head + 1, :], approx=False)
            acc_ref[pl.ds(rq, dim_head), :] = (
                ov[:dim_head, :] * inv_l).astype(jnp.bfloat16)          # deferred normalization
            return carry

        lax.fori_loop(0, heads, head_body, 0)

        # output 1x1 conv (channels-first) + bias; lane-dense (C, TQ) store
        y = jnp.dot(wout_ref[...], acc_ref[...],
                    preferred_element_type=jnp.float32)                 # (C, TQ)
        o_ref[0] = (y + bout_ref[...]).astype(o_ref.dtype)

    return kernel


def attention_pallas(x_nchw, w_qkv_conv, w_out_conv, b_out, *,
                     heads, dim_head, q_tile=128, exp_dtype=None):
    """x_nchw: (B, C, H, W); 1x1-conv weights in PyTorch (O, I) layout."""
    B, C, H, W = x_nchw.shape
    hw = H * W
    hidden = heads * dim_head
    scale = dim_head ** (-0.5)

    if exp_dtype is None:
        exp_dtype = _default_exp_dtype()

    # Query tile: 128-wide (lane-dense, multiple of 128) when it divides HW,
    # otherwise fall back to a single full-HW tile.
    tq = q_tile if (hw % q_tile == 0 and hw >= q_tile) else hw
    n_qt = hw // tq

    # NCHW -> (B, C, HW): free reshape, no transpose.
    x = x_nchw.reshape(B, C, hw)

    # Conv weights in channels-first matmul layout; fold the attention scale
    # into the q output channels; feed the MXU in bf16.
    w_qkv = w_qkv_conv.reshape(3 * hidden, C).astype(jnp.float32)
    w_qkv = w_qkv.at[:hidden, :].multiply(scale).astype(jnp.bfloat16)
    w_out = w_out_conv.reshape(C, hidden).astype(jnp.bfloat16)
    b_out2 = b_out.reshape(C, 1).astype(jnp.float32)

    flops_per_step = (2 * (3 * hidden) * C * hw                 # qkv projection
                      + heads * 2 * dim_head * hw * tq          # k^T q
                      + heads * 2 * (dim_head + 1) * hw * tq    # (v;1) @ e
                      + 2 * C * hidden * tq)                    # output projection
    cost = pl.CostEstimate(
        flops=B * n_qt * flops_per_step,
        transcendentals=B * n_qt * heads * hw * tq,
        bytes_accessed=(B * n_qt * C * hw * 4                   # x re-fetched per q-tile
                        + B * C * hw * 4                        # y out (f32)
                        + (3 * hidden * C + C * hidden) * 2     # bf16 weights
                        + C * 4))                               # bias

    kernel = make_attention_kernel(heads, dim_head, hw, tq, exp_dtype)
    out = pl.pallas_call(
        kernel,
        out_shape=jax.ShapeDtypeStruct((B, C, hw), x.dtype),
        grid_spec=pltpu.PrefetchScalarGridSpec(
            num_scalar_prefetch=0,
            grid=(B, n_qt),
            in_specs=[
                pl.BlockSpec((1, C, hw), lambda b, t: (b, 0, 0)),
                pl.BlockSpec((3 * hidden, C), lambda b, t: (0, 0)),
                pl.BlockSpec((C, hidden), lambda b, t: (0, 0)),
                pl.BlockSpec((C, 1), lambda b, t: (0, 0)),
            ],
            out_specs=pl.BlockSpec((1, C, tq), lambda b, t: (b, 0, t)),
            scratch_shapes=[
                pltpu.VMEM((3 * hidden, hw), jnp.bfloat16),   # fused qkv
                pltpu.VMEM((hidden, tq), jnp.bfloat16),       # per-head outputs
            ],
        ),
        compiler_params=pltpu.CompilerParams(
            dimension_semantics=("parallel", "parallel"),
            vmem_limit_bytes=32 * 1024 * 1024),
        cost_estimate=cost,
    )(x, w_qkv, w_out, b_out2)

    # (B, C, HW) -> NCHW: free reshape.
    return out.reshape(B, C, H, W)


def attention_ref(x, w_qkv_conv, w_out_conv, b_out, *, heads, dim_head):
    """Pure-JAX f32 reference matching the PyTorch forward exactly."""
    B, C, H, W = x.shape
    hidden = heads * dim_head
    scale = dim_head ** (-0.5)
    qkv = jnp.einsum('bchw,oc->bohw', x, w_qkv_conv)          # (B, 3*hidden, H, W)
    q, k, v = jnp.split(qkv, 3, axis=1)
    rr = lambda t: t.reshape(B, heads, dim_head, H * W)        # b (h c) x y -> b h c (xy)
    q, k, v = rr(q) * scale, rr(k), rr(v)
    sim = jnp.einsum('bhdi,bhdj->bhij', q, k)
    sim = sim - jnp.max(sim, axis=-1, keepdims=True)
    attn = jax.nn.softmax(sim, axis=-1)
    out = jnp.einsum('bhij,bhdj->bhid', attn, v)               # (B, h, HW, d)
    out = jnp.transpose(out, (0, 1, 3, 2)).reshape(B, hidden, H, W)
    return jnp.einsum('bchw,oc->bohw', out, w_out_conv) + b_out.reshape(1, C, 1, 1)


if __name__ == "__main__":
    # Small shapes consistent with the module: dim=4 channels, 16x16 spatial,
    # default heads=4 / dim_head=32 -> hidden_dim=128.
    B, C, H, W = 2, 4, 16, 16
    heads, dim_head = 4, 32
    hidden = heads * dim_head

    key = jax.random.PRNGKey(0)
    kx, k1, k2, k3 = jax.random.split(key, 4)
    x = jax.random.normal(kx, (B, C, H, W), dtype=jnp.float32)
    # Deterministic synthetic parameters (1x1 conv weights flattened to (O, I)).
    w_qkv_conv = jax.random.normal(k1, (3 * hidden, C), dtype=jnp.float32) * 0.05
    w_out_conv = jax.random.normal(k2, (C, hidden), dtype=jnp.float32) * 0.05
    b_out = jax.random.normal(k3, (C,), dtype=jnp.float32) * 0.05

    y = attention_pallas(x, w_qkv_conv, w_out_conv, b_out,
                         heads=heads, dim_head=dim_head)
    y = jax.block_until_ready(y)

    y_ref = attention_ref(x, w_qkv_conv, w_out_conv, b_out,
                          heads=heads, dim_head=dim_head)
    # bf16 MXU feeds (and bf16 exp on v6e/v7x) -> relaxed tolerance vs f32 ref.
    np.testing.assert_allclose(np.asarray(y), np.asarray(y_ref),
                               rtol=2e-2, atol=5e-3)
    print("KERNEL_OK")
</pallas_src>

<mosaic_0001>
module attributes {stable_mosaic.version = 11 : i64} {
  func.func @kernel(%arg0: i32, %arg1: i32, %arg2: memref<1x4x256xf32, #tpu.memory_space<vmem>>, %arg3: memref<384x4xbf16, #tpu.memory_space<vmem>>, %arg4: memref<4x128xbf16, #tpu.memory_space<vmem>>, %arg5: memref<4x1xf32, #tpu.memory_space<vmem>>, %arg6: memref<1x4x128xf32, #tpu.memory_space<vmem>>, %arg7: memref<384x256xbf16, #tpu.memory_space<vmem>>, %arg8: memref<128x128xbf16, #tpu.memory_space<vmem>>) attributes {dimension_semantics = [#tpu.dimension_semantics<parallel>, #tpu.dimension_semantics<parallel>], iteration_bounds = array<i64: 2, 2>, scalar_prefetch = 0 : i64, scratch_operands = 2 : i64, tpu.core_type = #tpu.core_type<tc>, window_params = [{transform_indices = @transform_0, window_bounds = array<i64: 1, 4, 256>}, {pipeline_mode = #tpu.pipeline_mode<synchronous>, transform_indices = @transform_1, window_bounds = array<i64: 384, 4>}, {pipeline_mode = #tpu.pipeline_mode<synchronous>, transform_indices = @transform_2, window_bounds = array<i64: 4, 128>}, {pipeline_mode = #tpu.pipeline_mode<synchronous>, transform_indices = @transform_3, window_bounds = array<i64: 4, 1>}, {transform_indices = @transform_4, window_bounds = array<i64: 1, 4, 128>}]} {
    %c128_i32 = arith.constant 128 : i32
    %0 = arith.muli %arg1, %c128_i32 : i32
    %1 = tpu.assume_multiple %0, 128 : i32
    %c0 = arith.constant 0 : index
    %c0_0 = arith.constant 0 : index
    %c0_1 = arith.constant 0 : index
    %2 = vector.load %arg2[%c0, %c0_0, %c0_1] : memref<1x4x256xf32, #tpu.memory_space<vmem>>, vector<1x4x256xf32>
    %3 = vector.shape_cast %2 : vector<1x4x256xf32> to vector<4x256xf32>
    %4 = arith.truncf %3 : vector<4x256xf32> to vector<4x256xbf16>
    %c0_2 = arith.constant 0 : index
    %c0_3 = arith.constant 0 : index
    %5 = vector.load %arg3[%c0_2, %c0_3] : memref<384x4xbf16, #tpu.memory_space<vmem>>, vector<384x4xbf16>
    %cst = arith.constant dense<0.000000e+00> : vector<384x256xf32>
    %6 = tpu.matmul %5, %4, %cst {dimension_numbers = #tpu.dot_dimension_numbers<[1], [0], [0], [1], [0, 0, 1, 1], [], []>} : vector<384x4xbf16>, vector<4x256xbf16>, vector<384x256xf32> -> vector<384x256xf32>
    %7 = arith.truncf %6 : vector<384x256xf32> to vector<384x256xbf16>
    %c0_4 = arith.constant 0 : index
    %c0_5 = arith.constant 0 : index
    %8 = vector.load %arg7[%c0_4, %c0_5] : memref<384x256xbf16, #tpu.memory_space<vmem>>, vector<384x256xbf16>
    tpu.vector_store %arg7[%c0_4, %c0_5], %7 {strides = array<i32>} : memref<384x256xbf16, #tpu.memory_space<vmem>>, vector<384x256xbf16>,
    %cst_6 = arith.constant 1.000000e+00 : bf16
    %9 = vector.broadcast %cst_6 : bf16 to vector<1x256xbf16>
    %c0_i32 = arith.constant 0 : i32
    %c4_i32 = arith.constant 4 : i32
    %10 = arith.addi %c0_i32, %c4_i32 : i32
    %c1_i32 = arith.constant 1 : i32
    scf.for %arg9 = %c0_i32 to %10 step %c1_i32  : i32 {
      %c32_i32 = arith.constant 32 : i32
      %20 = arith.muli %arg9, %c32_i32 : i32
      %21 = tpu.assume_multiple %20, 32 : i32
      %c32_i32_18 = arith.constant 32 : i32
      %22 = arith.muli %arg9, %c32_i32_18 : i32
      %c128_i32_19 = arith.constant 128 : i32
      %23 = arith.addi %c128_i32_19, %22 : i32
      %24 = tpu.assume_multiple %23, 32 : i32
      %c32_i32_20 = arith.constant 32 : i32
      %25 = arith.muli %arg9, %c32_i32_20 : i32
      %c256_i32 = arith.constant 256 : i32
      %26 = arith.addi %c256_i32, %25 : i32
      %27 = tpu.assume_multiple %26, 32 : i32
      %28 = arith.index_cast %21 : i32 to index
      %29 = arith.index_cast %1 : i32 to index
      %30 = vector.load %arg7[%28, %29] : memref<384x256xbf16, #tpu.memory_space<vmem>>, vector<32x128xbf16>
      %31 = arith.index_cast %24 : i32 to index
      %c0_21 = arith.constant 0 : index
      %32 = vector.load %arg7[%31, %c0_21] : memref<384x256xbf16, #tpu.memory_space<vmem>>, vector<32x256xbf16>
      %33 = arith.index_cast %27 : i32 to index
      %c0_22 = arith.constant 0 : index
      %34 = vector.load %arg7[%33, %c0_22] : memref<384x256xbf16, #tpu.memory_space<vmem>>, vector<32x256xbf16>
      %cst_23 = arith.constant dense<0.000000e+00> : vector<256x128xf32>
      %35 = tpu.matmul %32, %30, %cst_23 {dimension_numbers = #tpu.dot_dimension_numbers<[0], [0], [1], [1], [0, 1, 1, 1], [], []>} : vector<32x256xbf16>, vector<32x128xbf16>, vector<256x128xf32> -> vector<256x128xf32>
      %cst_24 = arith.constant dense<0xFF800000> : vector<128xf32>
      %36 = vector.multi_reduction <maximumf>, %35, %cst_24 [0] : vector<256x128xf32> to vector<128xf32>
      %37 = vector.shape_cast %36 : vector<128xf32> to vector<1x128xf32>
      %38 = vector.broadcast %37 : vector<1x128xf32> to vector<256x128xf32>
      %39 = arith.subf %35, %38 : vector<256x128xf32>
      %40 = math.exp %39 : vector<256x128xf32>
      %41 = arith.truncf %40 : vector<256x128xf32> to vector<256x128xbf16>
      %42 = tpu.concatenate %34, %9 in 0 : vector<32x256xbf16>, vector<1x256xbf16> -> vector<33x256xbf16>
      %cst_25 = arith.constant dense<0.000000e+00> : vector<33x128xf32>
      %43 = tpu.matmul %42, %41, %cst_25 {dimension_numbers = #tpu.dot_dimension_numbers<[1], [0], [0], [1], [0, 0, 1, 1], [], []>} : vector<33x256xbf16>, vector<256x128xbf16>, vector<33x128xf32> -> vector<33x128xf32>
      %44 = vector.extract_strided_slice %43 {offsets = [32, 0], sizes = [1, 128], strides = [1, 1]} : vector<33x128xf32> to vector<1x128xf32>
      %45 = tpu.reciprocal %44 : vector<1x128xf32> -> vector<1x128xf32>
      %46 = vector.extract_strided_slice %43 {offsets = [0, 0], sizes = [32, 128], strides = [1, 1]} : vector<33x128xf32> to vector<32x128xf32>
      %47 = vector.broadcast %45 : vector<1x128xf32> to vector<32x128xf32>
      %48 = arith.mulf %46, %47 : vector<32x128xf32>
      %49 = arith.truncf %48 : vector<32x128xf32> to vector<32x128xbf16>
      %50 = arith.index_cast %21 : i32 to index
      %c0_26 = arith.constant 0 : index
      %51 = vector.load %arg8[%50, %c0_26] : memref<128x128xbf16, #tpu.memory_space<vmem>>, vector<32x128xbf16>
      tpu.vector_store %arg8[%50, %c0_26], %49 {strides = array<i32>} : memref<128x128xbf16, #tpu.memory_space<vmem>>, vector<32x128xbf16>,
    }
    %c4_i32_7 = arith.constant 4 : i32
    %c0_8 = arith.constant 0 : index
    %c0_9 = arith.constant 0 : index
    %11 = vector.load %arg4[%c0_8, %c0_9] : memref<4x128xbf16, #tpu.memory_space<vmem>>, vector<4x128xbf16>
    %c0_10 = arith.constant 0 : index
    %c0_11 = arith.constant 0 : index
    %12 = vector.load %arg8[%c0_10, %c0_11] : memref<128x128xbf16, #tpu.memory_space<vmem>>, vector<128x128xbf16>
    %cst_12 = arith.constant dense<0.000000e+00> : vector<4x128xf32>
    %13 = tpu.matmul %11, %12, %cst_12 {dimension_numbers = #tpu.dot_dimension_numbers<[1], [0], [0], [1], [0, 0, 1, 1], [], []>} : vector<4x128xbf16>, vector<128x128xbf16>, vector<4x128xf32> -> vector<4x128xf32>
    %c0_13 = arith.constant 0 : index
    %c0_14 = arith.constant 0 : index
    %14 = vector.load %arg5[%c0_13, %c0_14] : memref<4x1xf32, #tpu.memory_space<vmem>>, vector<4x1xf32>
    %15 = vector.broadcast %14 : vector<4x1xf32> to vector<4x128xf32>
    %16 = arith.addf %13, %15 : vector<4x128xf32>
    %c0_15 = arith.constant 0 : index
    %c0_16 = arith.constant 0 : index
    %c0_17 = arith.constant 0 : index
    %17 = vector.load %arg6[%c0_15, %c0_16, %c0_17] : memref<1x4x128xf32, #tpu.memory_space<vmem>>, vector<1x4x128xf32>
    %18 = vector.shape_cast %17 : vector<1x4x128xf32> to vector<4x128xf32>
    %19 = vector.shape_cast %16 : vector<4x128xf32> to vector<1x4x128xf32>
    tpu.vector_store %arg6[%c0_15, %c0_16, %c0_17], %19 {strides = array<i32>} : memref<1x4x128xf32, #tpu.memory_space<vmem>>, vector<1x4x128xf32>,
    return
  }
  func.func @transform_0(%arg0: i32, %arg1: i32) -> (i32, i32, i32) {
    %c0_i32 = arith.constant 0 : i32
    %c0_i32_0 = arith.constant 0 : i32
    %c0_i32_1 = arith.constant 0 : i32
    return %arg0, %c0_i32, %c0_i32_0 : i32, i32, i32
  }
  func.func @transform_1(%arg0: i32, %arg1: i32) -> (i32, i32) {
    %c0_i32 = arith.constant 0 : i32
    %c0_i32_0 = arith.constant 0 : i32
    %c0_i32_1 = arith.constant 0 : i32
    return %c0_i32, %c0_i32_0 : i32, i32
  }
  func.func @transform_2(%arg0: i32, %arg1: i32) -> (i32, i32) {
    %c0_i32 = arith.constant 0 : i32
    %c0_i32_0 = arith.constant 0 : i32
    %c0_i32_1 = arith.constant 0 : i32
    return %c0_i32, %c0_i32_0 : i32, i32
  }
  func.func @transform_3(%arg0: i32, %arg1: i32) -> (i32, i32) {
    %c0_i32 = arith.constant 0 : i32
    %c0_i32_0 = arith.constant 0 : i32
    %c0_i32_1 = arith.constant 0 : i32
    return %c0_i32, %c0_i32_0 : i32, i32
  }
  func.func @transform_4(%arg0: i32, %arg1: i32) -> (i32, i32, i32) {
    %c0_i32 = arith.constant 0 : i32
    %c0_i32_0 = arith.constant 0 : i32
    return %arg0, %c0_i32, %arg1 : i32, i32, i32
  }
}

</mosaic_0001>

<llo_original>
// kernel: tpu_custom_call.1
$region0: #{tpu_custom_call.1}
  #allocation0 [shape = 'u32[]', space=smem, size = 0x4, offset = 0x4, fixed_abs, tag = 'smem constant byte address 0x4 - core index']
  #allocation1 [shape = 'u32[72,128]{1,0:T(1,128)}', space=vmem, size = 0x9000, scoped, tag = 'internal scratch']
  #allocation2 [shape = 'bf16[384,256]{1,0:T(8,128)(2,1)}', space=vmem, size = 0x30000, scoped, tag = 'scratch operand']
  #allocation3 [shape = 'bf16[128,128]{1,0:T(8,128)(2,1)}', space=vmem, size = 0x8000, scoped, tag = 'scratch operand']
  %s0 = inlined_call_operand.vmem [shape: f32[2,4,256], index: 0, kind: input, shape index: {}]
  %s1 = inlined_call_operand.vmem [shape: bf16[384,4], index: 1, kind: input, shape index: {}]
  %s2 = inlined_call_operand.vmem [shape: bf16[4,128], index: 2, kind: input, shape index: {}]
  %s3 = inlined_call_operand.vmem [shape: f32[4,1], index: 3, kind: input, shape index: {}]
  %s4 = inlined_call_operand.hbm [shape: f32[2,4,256], index: 4, kind: output, shape index: {}]
  %s5 = sld [smem:[#allocation0]]
  $region56: #{tpu_custom_call.1} parent=0
    _
  %s7 = ssub.s32 1, %s5
  %s8 = scalar_select 0, %s7, %s5
  $region1: #{tpu_custom_call.1} parent=0
    #allocation4 [shape = 'u8[4096]{0}', space=vmem, size = 0x1000, scoped, tag = 'output window, operand 0']
    #allocation5 [shape = 's32[2]{0}', space=sflag, size = 0x8, scoped, tag = 'scoped memory for tpu_custom_call.1']
    %9 = vsyncpa [#allocation5], 0
    %s10 = scalar_lea.sflag [#allocation5], 1
    %11 = vsyncpa %s10, 0
    loop: start=0, step=1, limit=6
    $region2: #{tpu_custom_call.1} parent=1 // loop_pre_header
      _
    $region3: #{tpu_custom_call.1} parent=1 // loop_header
      %s13 = sphi 0, %s17
      %p14 = scmp.ge.s32.totalorder %s13, 6
      %s20 = sphi 0, %s32
      %s21 = sphi 0, %s28
      %s22 = sphi 0, %s20
      %s23 = sphi 0, %s21
      %s24 = sphi 0, %s22
      %s25 = sphi 0, %s23
      %s35 = sphi 0, %s37
      %s38 = sphi 0, %s35
      %s39 = sphi 0, %s38
      %s55 = sphi 0, %s39
      %s59 = sphi 0, %s59
      %s61 = sphi 0, %s59
      %s62 = sphi 0, %s61
      %s76 = sphi 0, %s62
      %s80 = sphi 0, %s80
      %s82 = sphi 0, %s80
      %s83 = sphi 0, %s82
      %s97 = sphi 0, %s83
      %s101 = sphi 0, %s101
      %s103 = sphi 0, %s101
      %s104 = sphi 0, %s103
      %s118 = sphi 0, %s104
      %s126 = sphi 0, %s128
      %s129 = sphi 0, %s126
      %s130 = sphi 0, %s129
      %s146 = sphi 0, %s130
    $region4: #{tpu_custom_call.1} parent=1 // loop_header_branch
      %16 = sbr.rel (%p14) target = $region8
    $region5: #{tpu_custom_call.1} parent=1 // loop_body
      %s18 = ssub.s32 %s13, 1
      %s19 = ssub.s32 %s13, 2
      %s26 = sadd.s32 1, %s21
      %p27 = scmp.ge.s32.totalorder %s26, 2
      %s28 = scalar_select %p27, 0, %s26
      %s29 = sadd.s32 1, %s20
      %s30 = scalar_select %p27, %s29, %s20
      %p31 = scmp.ge.s32.totalorder %s30, 2
      %s32 = scalar_select %p31, 0, %s30
      %s33 = ssub.s32 %s20, %s32
      %p34 = scmp.eq.s32.totalorder %s33, 0
      %s36 = sadd.s32 %s35, 1
      %s37 = scalar_select %p34, %s35, %s36
      %p40 = pneg %p34
      %p41 = scmp.eq.s32.totalorder %s13, 3
      %p42 = por %p40, %p41
      %p43 = scmp.ne.s32.totalorder %s35, %s38
      %p44 = scmp.eq.s32.totalorder %s13, 0
      %p45 = por %p43, %p44
      %p46 = scmp.ne.s32.totalorder %s35, %s38
      %p47 = scmp.eq.s32.totalorder %s18, 3
      %p48 = por %p46, %p47
      %p49 = scmp.ne.s32.totalorder %s38, %s39
      %p50 = scmp.eq.s32.totalorder %s18, 0
      %p51 = por %p49, %p50
      %p52 = scmp.ne.s32.totalorder %s38, %s39
      %p53 = scmp.eq.s32.totalorder %s19, 3
      %p54 = por %p52, %p53
      %p56 = scmp.ne.s32.totalorder %s39, %s55
      %p57 = scmp.eq.s32.totalorder %s19, 0
      %p58 = por %p56, %p57
      %s60 = sadd.s32 %s59, 1
      %p63 = scmp.eq.s32.totalorder %s13, 3
      %p64 = scmp.ne.s32.totalorder %s59, %s61
      %p65 = scmp.eq.s32.totalorder %s13, 0
      %p66 = por %p64, %p65
      %p67 = scmp.ne.s32.totalorder %s59, %s61
      %p68 = scmp.eq.s32.totalorder %s18, 3
      %p69 = por %p67, %p68
      %p70 = scmp.ne.s32.totalorder %s61, %s62
      %p71 = scmp.eq.s32.totalorder %s18, 0
      %p72 = por %p70, %p71
      %p73 = scmp.ne.s32.totalorder %s61, %s62
      %p74 = scmp.eq.s32.totalorder %s19, 3
      %p75 = por %p73, %p74
      %p77 = scmp.ne.s32.totalorder %s62, %s76
      %p78 = scmp.eq.s32.totalorder %s19, 0
      %p79 = por %p77, %p78
      %s81 = sadd.s32 %s80, 1
      %p84 = scmp.eq.s32.totalorder %s13, 3
      %p85 = scmp.ne.s32.totalorder %s80, %s82
      %p86 = scmp.eq.s32.totalorder %s13, 0
      %p87 = por %p85, %p86
      %p88 = scmp.ne.s32.totalorder %s80, %s82
      %p89 = scmp.eq.s32.totalorder %s18, 3
      %p90 = por %p88, %p89
      %p91 = scmp.ne.s32.totalorder %s82, %s83
      %p92 = scmp.eq.s32.totalorder %s18, 0
      %p93 = por %p91, %p92
      %p94 = scmp.ne.s32.totalorder %s82, %s83
      %p95 = scmp.eq.s32.totalorder %s19, 3
      %p96 = por %p94, %p95
      %p98 = scmp.ne.s32.totalorder %s83, %s97
      %p99 = scmp.eq.s32.totalorder %s19, 0
      %p100 = por %p98, %p99
      %s102 = sadd.s32 %s101, 1
      %p105 = scmp.eq.s32.totalorder %s13, 3
      %p106 = scmp.ne.s32.totalorder %s101, %s103
      %p107 = scmp.eq.s32.totalorder %s13, 0
      %p108 = por %p106, %p107
      %p109 = scmp.ne.s32.totalorder %s101, %s103
      %p110 = scmp.eq.s32.totalorder %s18, 3
      %p111 = por %p109, %p110
      %p112 = scmp.ne.s32.totalorder %s103, %s104
      %p113 = scmp.eq.s32.totalorder %s18, 0
      %p114 = por %p112, %p113
      %p115 = scmp.ne.s32.totalorder %s103, %s104
      %p116 = scmp.eq.s32.totalorder %s19, 3
      %p117 = por %p115, %p116
      %p119 = scmp.ne.s32.totalorder %s104, %s118
      %p120 = scmp.eq.s32.totalorder %s19, 0
      %p121 = por %p119, %p120
      %s122 = ssub.s32 %s20, %s32
      %s123 = ssub.s32 %s21, %s28
      %s124 = sor.u32 %s122, %s123
      %p125 = scmp.eq.s32.totalorder %s124, 0
      %s127 = sadd.s32 %s126, 1
      %s128 = scalar_select %p125, %s126, %s127
      %p131 = pneg %p125
      %p132 = scmp.eq.s32.totalorder %s13, 3
      %p133 = por %p131, %p132
      %p134 = scmp.ne.s32.totalorder %s126, %s129
      %p135 = scmp.eq.s32.totalorder %s13, 0
      %p136 = por %p134, %p135
      %p137 = scmp.ne.s32.totalorder %s126, %s129
      %p138 = scmp.eq.s32.totalorder %s18, 3
      %p139 = por %p137, %p138
      %p140 = scmp.ne.s32.totalorder %s129, %s130
      %p141 = scmp.eq.s32.totalorder %s18, 0
      %p142 = por %p140, %p141
      %p143 = scmp.ne.s32.totalorder %s129, %s130
      %p144 = scmp.eq.s32.totalorder %s19, 3
      %p145 = por %p143, %p144
      %p147 = scmp.ne.s32.totalorder %s130, %s146
      %p148 = scmp.eq.s32.totalorder %s19, 0
      %p149 = por %p147, %p148
      %p150 = scmp.le.s32.totalorder 1, %s13
      %p151 = scmp.lt.s32.totalorder %s13, 5
      %p152 = pnand %p150, %p151
      %p153 = pneg %p152
      // Predicated region
      $region9: #{tpu_custom_call.1} parent=5 // pred_check
        _
      $region10: #{tpu_custom_call.1} parent=5 // pred_check_branch
        %155 = sbr.rel (%p152) target = $region12
      $region11: #{tpu_custom_call.1} parent=5 // pred_region
        %s156 = ssub.s32 %s13, 1
        // Predicated region
        $region13: #{tpu_custom_call.1} parent=11 // pred_check
          %p157 = pneg %p72
        $region14: #{tpu_custom_call.1} parent=11 // pred_check_branch
          %159 = sbr.rel (%p157) target = $region16
        $region15: #{tpu_custom_call.1} parent=11 // pred_region
          _
        $region16: #{tpu_custom_call.1} parent=11 // pred_fallthru
          _
        // Predicated region
        $region17: #{tpu_custom_call.1} parent=11 // pred_check
          %p160 = pneg %p93
        $region18: #{tpu_custom_call.1} parent=11 // pred_check_branch
          %162 = sbr.rel (%p160) target = $region20
        $region19: #{tpu_custom_call.1} parent=11 // pred_region
          _
        $region20: #{tpu_custom_call.1} parent=11 // pred_fallthru
          _
        // Predicated region
        $region21: #{tpu_custom_call.1} parent=11 // pred_check
          %p163 = pneg %p114
        $region22: #{tpu_custom_call.1} parent=11 // pred_check_branch
          %165 = sbr.rel (%p163) target = $region24
        $region23: #{tpu_custom_call.1} parent=11 // pred_region
          _
        $region24: #{tpu_custom_call.1} parent=11 // pred_fallthru
          _
      $region12: #{tpu_custom_call.1} parent=5 // pred_fallthru
        _
      %p166 = scmp.lt.s32.totalorder %s13, 4
      // Predicated region
      $region25: #{tpu_custom_call.1} parent=5 // pred_check
        %p167 = pneg %p166
      $region26: #{tpu_custom_call.1} parent=5 // pred_check_branch
        %169 = sbr.rel (%p167) target = $region28
      $region27: #{tpu_custom_call.1} parent=5 // pred_region
        // Predicated region
        $region29: #{tpu_custom_call.1} parent=27 // pred_check
          %p170 = pneg %p45
        $region30: #{tpu_custom_call.1} parent=27 // pred_check_branch
          %172 = sbr.rel (%p170) target = $region32
        $region31: #{tpu_custom_call.1} parent=27 // pred_region
          %p173 = scmp.lt.s32.totalorder %s20, 1
          %s174 = scalar_select %p173, %s20, 1
          %s175 = smul.addr %s174, 2
          %s176 = smul.addr %s175, 4
          %s177 = scalar_lea.vmem %s0, %s176
        $region32: #{tpu_custom_call.1} parent=27 // pred_fallthru
          _
      $region28: #{tpu_custom_call.1} parent=5 // pred_fallthru
        _
      %p178 = scmp.le.s32.totalorder 1, %s13
      %p179 = scmp.lt.s32.totalorder %s13, 5
      %p180 = pnand %p178, %p179
      %p181 = pneg %p180
      // Predicated region
      $region33: #{tpu_custom_call.1} parent=5 // pred_check
        _
      $region34: #{tpu_custom_call.1} parent=5 // pred_check_branch
        %183 = sbr.rel (%p180) target = $region36
      $region35: #{tpu_custom_call.1} parent=5 // pred_region
        %s184 = ssub.s32 %s13, 1
        %p185 = scmp.lt.s32.totalorder %s22, 1
        %s186 = scalar_select %p185, %s22, 1
        %s187 = smul.addr %s186, 2
        %s188 = smul.addr %s187, 4
        %s189 = scalar_lea.vmem %s0, %s188
        %p190 = pneg %p51
        %p191 = pneg %p48
        %p192 = pneg %p72
        %p193 = pneg %p69
        %p194 = pneg %p93
        %p195 = pneg %p90
        %p196 = pneg %p114
        %p197 = pneg %p111
        %p198 = pneg %p142
        %p199 = pneg %p139
        %s200 = sand.u32 %s129, 1
        %s201 = scalar_lea.sflag [#allocation5], %s200
        %s202 = sand.u32 %s129, 1
        %s203 = smul.addr %s202, 4
        %s204 = scalar_lea.vmem [#allocation4], %s203
        %p205 = scmp.lt.s32.totalorder %s22, 1
        %s206 = scalar_select %p205, %s22, 1
        %s207 = smul.addr %s206, 2
        %s208 = smul.addr %s207, 4
        %s209 = scalar_lea.vmem %s0, %s208
        %s212 = smul.u32 %s23, 128
        %v213 = vld [vmem:[%s209] sm:$0xff]
        %215 = vst [vmem:[#allocation1] ss:$2 sm:$0xff] %v213
        %v216 = vld.sshfl [vmem:[#allocation1] sm:$0xff pattern:$0x75316420]
        %v217 = vld.sshfl [vmem:[#allocation1 + $0x8] sm:$0xff pattern:$0x75316420]
        %v220 = vpack.c.bf16 %v216, %v216
        %v221 = vpack.c.bf16 %v217, %v217
        %v222 = vld [vmem:[%s1] sm:$0xf]
        %v223 = vld [vmem:[%s1 + $0x4] sm:$0xf]
        %v224 = vld [vmem:[%s1 + $0x8] sm:$0xf]
        %v225 = vld [vmem:[%s1 + $0xc] sm:$0xf]
        %v226 = vld [vmem:[%s1 + $0x10] sm:$0xf]
        %v227 = vld [vmem:[%s1 + $0x14] sm:$0xf]
        %v228 = vld [vmem:[%s1 + $0x18] sm:$0xf]
        %v229 = vld [vmem:[%s1 + $0x1c] sm:$0xf]
        %v230 = vld [vmem:[%s1 + $0x20] sm:$0xf]
        %v231 = vld [vmem:[%s1 + $0x24] sm:$0xf]
        %v232 = vld [vmem:[%s1 + $0x28] sm:$0xf]
        %v233 = vld [vmem:[%s1 + $0x2c] sm:$0xf]
        %v234 = vld [vmem:[%s1 + $0x30] sm:$0xf]
        %v235 = vld [vmem:[%s1 + $0x34] sm:$0xf]
        %v236 = vld [vmem:[%s1 + $0x38] sm:$0xf]
        %v237 = vld [vmem:[%s1 + $0x3c] sm:$0xf]
        %v238 = vld [vmem:[%s1 + $0x40] sm:$0xf]
        %v239 = vld [vmem:[%s1 + $0x44] sm:$0xf]
        %v240 = vld [vmem:[%s1 + $0x48] sm:$0xf]
        %v241 = vld [vmem:[%s1 + $0x4c] sm:$0xf]
        %v242 = vld [vmem:[%s1 + $0x50] sm:$0xf]
        %v243 = vld [vmem:[%s1 + $0x54] sm:$0xf]
        %v244 = vld [vmem:[%s1 + $0x58] sm:$0xf]
        %v245 = vld [vmem:[%s1 + $0x5c] sm:$0xf]
        %v246 = vld [vmem:[%s1 + $0x60] sm:$0xf]
        %v247 = vld [vmem:[%s1 + $0x64] sm:$0xf]
        %v248 = vld [vmem:[%s1 + $0x68] sm:$0xf]
        %v249 = vld [vmem:[%s1 + $0x6c] sm:$0xf]
        %v250 = vld [vmem:[%s1 + $0x70] sm:$0xf]
        %v251 = vld [vmem:[%s1 + $0x74] sm:$0xf]
        %v252 = vld [vmem:[%s1 + $0x78] sm:$0xf]
        %v253 = vld [vmem:[%s1 + $0x7c] sm:$0xf]
        %v254 = vld [vmem:[%s1 + $0x80] sm:$0xf]
        %v255 = vld [vmem:[%s1 + $0x84] sm:$0xf]
        %v256 = vld [vmem:[%s1 + $0x88] sm:$0xf]
        %v257 = vld [vmem:[%s1 + $0x8c] sm:$0xf]
        %v258 = vld [vmem:[%s1 + $0x90] sm:$0xf]
        %v259 = vld [vmem:[%s1 + $0x94] sm:$0xf]
        %v260 = vld [vmem:[%s1 + $0x98] sm:$0xf]
        %v261 = vld [vmem:[%s1 + $0x9c] sm:$0xf]
        %v262 = vld [vmem:[%s1 + $0xa0] sm:$0xf]
        %v263 = vld [vmem:[%s1 + $0xa4] sm:$0xf]
        %v264 = vld [vmem:[%s1 + $0xa8] sm:$0xf]
        %v265 = vld [vmem:[%s1 + $0xac] sm:$0xf]
        %v266 = vld [vmem:[%s1 + $0xb0] sm:$0xf]
        %v267 = vld [vmem:[%s1 + $0xb4] sm:$0xf]
        %v268 = vld [vmem:[%s1 + $0xb8] sm:$0xf]
        %v269 = vld [vmem:[%s1 + $0xbc] sm:$0xf]
        %v318 = vunpack.c.l.b16 %v222
        %v319 = vunpack.c.l.b16 %v223
        %v320 = vunpack.c.l.b16 %v224
        %v321 = vunpack.c.l.b16 %v225
        %v322 = vunpack.c.l.b16 %v226
        %v323 = vunpack.c.l.b16 %v227
        %v324 = vunpack.c.l.b16 %v228
        %v325 = vunpack.c.l.b16 %v229
        %v326 = vunpack.c.l.b16 %v230
        %v327 = vunpack.c.l.b16 %v231
        %v328 = vunpack.c.l.b16 %v232
        %v329 = vunpack.c.l.b16 %v233
        %v330 = vunpack.c.l.b16 %v234
        %v331 = vunpack.c.l.b16 %v235
        %v332 = vunpack.c.l.b16 %v236
        %v333 = vunpack.c.l.b16 %v237
        %v334 = vunpack.c.l.b16 %v238
        %v335 = vunpack.c.l.b16 %v239
        %v336 = vunpack.c.l.b16 %v240
        %v337 = vunpack.c.l.b16 %v241
        %v338 = vunpack.c.l.b16 %v242
        %v339 = vunpack.c.l.b16 %v243
        %v340 = vunpack.c.l.b16 %v244
        %v341 = vunpack.c.l.b16 %v245
        %v342 = vunpack.c.l.b16 %v246
        %v343 = vunpack.c.l.b16 %v247
        %v344 = vunpack.c.l.b16 %v248
        %v345 = vunpack.c.l.b16 %v249
        %v346 = vunpack.c.l.b16 %v250
        %v347 = vunpack.c.l.b16 %v251
        %v348 = vunpack.c.l.b16 %v252
        %v349 = vunpack.c.l.b16 %v253
        %v350 = vunpack.c.l.b16 %v254
        %v351 = vunpack.c.l.b16 %v255
        %v352 = vunpack.c.l.b16 %v256
        %v353 = vunpack.c.l.b16 %v257
        %v354 = vunpack.c.l.b16 %v258
        %v355 = vunpack.c.l.b16 %v259
        %v356 = vunpack.c.l.b16 %v260
        %v357 = vunpack.c.l.b16 %v261
        %v358 = vunpack.c.l.b16 %v262
        %v359 = vunpack.c.l.b16 %v263
        %v360 = vunpack.c.l.b16 %v264
        %v361 = vunpack.c.l.b16 %v265
        %v362 = vunpack.c.l.b16 %v266
        %v363 = vunpack.c.l.b16 %v267
        %v364 = vunpack.c.l.b16 %v268
        %v365 = vunpack.c.l.b16 %v269
        %v366 = vpack.c.b16 %v319, %v318
        %v367 = vpack.c.b16 %v321, %v320
        %v368 = vpack.c.b16 %v323, %v322
        %v369 = vpack.c.b16 %v325, %v324
        %v370 = vpack.c.b16 %v327, %v326
        %v371 = vpack.c.b16 %v329, %v328
        %v372 = vpack.c.b16 %v331, %v330
        %v373 = vpack.c.b16 %v333, %v332
        %v374 = vpack.c.b16 %v335, %v334
        %v375 = vpack.c.b16 %v337, %v336
        %v376 = vpack.c.b16 %v339, %v338
        %v377 = vpack.c.b16 %v341, %v340
        %v378 = vpack.c.b16 %v343, %v342
        %v379 = vpack.c.b16 %v345, %v344
        %v380 = vpack.c.b16 %v347, %v346
        %v381 = vpack.c.b16 %v349, %v348
        %v382 = vpack.c.b16 %v351, %v350
        %v383 = vpack.c.b16 %v353, %v352
        %v384 = vpack.c.b16 %v355, %v354
        %v385 = vpack.c.b16 %v357, %v356
        %v386 = vpack.c.b16 %v359, %v358
        %v387 = vpack.c.b16 %v361, %v360
        %v388 = vpack.c.b16 %v363, %v362
        %v389 = vpack.c.b16 %v365, %v364
        %vm390 = vcmask 31744
        %v392 = vsel %vm390, %v366, 0
        %v395 = vsel %vm390, %v367, 0
        %v398 = vsel %vm390, %v368, 0
        %v401 = vsel %vm390, %v369, 0
        %v404 = vsel %vm390, %v370, 0
        %v407 = vsel %vm390, %v371, 0
        %v410 = vsel %vm390, %v372, 0
        %v413 = vsel %vm390, %v373, 0
        %v416 = vsel %vm390, %v374, 0
        %v419 = vsel %vm390, %v375, 0
        %v422 = vsel %vm390, %v376, 0
        %v425 = vsel %vm390, %v377, 0
        %v428 = vsel %vm390, %v378, 0
        %v431 = vsel %vm390, %v379, 0
        %v434 = vsel %vm390, %v380, 0
        %v437 = vsel %vm390, %v381, 0
        %v440 = vsel %vm390, %v382, 0
        %v443 = vsel %vm390, %v383, 0
        %v446 = vsel %vm390, %v384, 0
        %v449 = vsel %vm390, %v385, 0
        %v452 = vsel %vm390, %v386, 0
        %v455 = vsel %vm390, %v387, 0
        %v458 = vsel %vm390, %v388, 0
        %v461 = vsel %vm390, %v389, 0
        %vm463 = vcmask 1041408
        %v465 = vsel %vm463, %v220, 0
        %v468 = vsel %vm463, %v221, 0
        %470 = vmatpush.bf16.msra.mxu0 0
        %471 = vmatpush.bf16.msra.mxu0 0
        %472 = vmatpush.bf16.msra.mxu0 0
        %473 = vmatpush.bf16.msra.mxu0 0
        %474 = vmatpush.bf16.msra.mxu0 0
        %475 = vmatpush.bf16.msra.mxu0 0
        %476 = vmatpush.bf16.msra.mxu0 0
        %477 = vmatpush.bf16.msra.mxu0 %v465
        %478 = vmatmul.bf16.gmra.mxu0 %v392
        %v479 = vpop.f32.mrf.mxu0
        %v480 = vadd.f32 0.0, %v479
        %v481 = vpop.f32.mrf.mxu0
        %v482 = vadd.f32 0.0, %v481
        %483 = vmatmul.bf16.gmra.mxu0 %v395
        %v484 = vpop.f32.mrf.mxu0
        %v485 = vadd.f32 0.0, %v484
        %v486 = vpop.f32.mrf.mxu0
        %v487 = vadd.f32 0.0, %v486
        %488 = vmatmul.bf16.gmra.mxu0 %v398
        %v489 = vpop.f32.mrf.mxu0
        %v490 = vadd.f32 0.0, %v489
        %v491 = vpop.f32.mrf.mxu0
        %v492 = vadd.f32 0.0, %v491
        %493 = vmatmul.bf16.gmra.mxu0 %v401
        %v494 = vpop.f32.mrf.mxu0
        %v495 = vadd.f32 0.0, %v494
        %v496 = vpop.f32.mrf.mxu0
        %v497 = vadd.f32 0.0, %v496
        %498 = vmatmul.bf16.gmra.mxu0 %v404
        %v499 = vpop.f32.mrf.mxu0
        %v500 = vadd.f32 0.0, %v499
        %v501 = vpop.f32.mrf.mxu0
        %v502 = vadd.f32 0.0, %v501
        %503 = vmatmul.bf16.gmra.mxu0 %v407
        %v504 = vpop.f32.mrf.mxu0
        %v505 = vadd.f32 0.0, %v504
        %v506 = vpop.f32.mrf.mxu0
        %v507 = vadd.f32 0.0, %v506
        %508 = vmatmul.bf16.gmra.mxu0 %v410
        %v509 = vpop.f32.mrf.mxu0
        %v510 = vadd.f32 0.0, %v509
        %v511 = vpop.f32.mrf.mxu0
        %v512 = vadd.f32 0.0, %v511
        %513 = vmatmul.bf16.gmra.mxu0 %v413
        %v514 = vpop.f32.mrf.mxu0
        %v515 = vadd.f32 0.0, %v514
        %v516 = vpop.f32.mrf.mxu0
        %v517 = vadd.f32 0.0, %v516
        %518 = vmatmul.bf16.gmra.mxu0 %v416
        %v519 = vpop.f32.mrf.mxu0
        %v520 = vadd.f32 0.0, %v519
        %v521 = vpop.f32.mrf.mxu0
        %v522 = vadd.f32 0.0, %v521
        %523 = vmatmul.bf16.gmra.mxu0 %v419
        %v524 = vpop.f32.mrf.mxu0
        %v525 = vadd.f32 0.0, %v524
        %v526 = vpop.f32.mrf.mxu0
        %v527 = vadd.f32 0.0, %v526
        %528 = vmatmul.bf16.gmra.mxu0 %v422
        %v529 = vpop.f32.mrf.mxu0
        %v530 = vadd.f32 0.0, %v529
        %v531 = vpop.f32.mrf.mxu0
        %v532 = vadd.f32 0.0, %v531
        %533 = vmatmul.bf16.gmra.mxu0 %v425
        %v534 = vpop.f32.mrf.mxu0
        %v535 = vadd.f32 0.0, %v534
        %v536 = vpop.f32.mrf.mxu0
        %v537 = vadd.f32 0.0, %v536
        %538 = vmatmul.bf16.gmra.mxu0 %v428
        %v539 = vpop.f32.mrf.mxu0
        %v540 = vadd.f32 0.0, %v539
        %v541 = vpop.f32.mrf.mxu0
        %v542 = vadd.f32 0.0, %v541
        %543 = vmatmul.bf16.gmra.mxu0 %v431
        %v544 = vpop.f32.mrf.mxu0
        %v545 = vadd.f32 0.0, %v544
        %v546 = vpop.f32.mrf.mxu0
        %v547 = vadd.f32 0.0, %v546
        %548 = vmatmul.bf16.gmra.mxu0 %v434
        %v549 = vpop.f32.mrf.mxu0
        %v550 = vadd.f32 0.0, %v549
        %v551 = vpop.f32.mrf.mxu0
        %v552 = vadd.f32 0.0, %v551
        %553 = vmatmul.bf16.gmra.mxu0 %v437
        %v554 = vpop.f32.mrf.mxu0
        %v555 = vadd.f32 0.0, %v554
        %v556 = vpop.f32.mrf.mxu0
        %v557 = vadd.f32 0.0, %v556
        %558 = vmatmul.bf16.gmra.mxu0 %v440
        %v559 = vpop.f32.mrf.mxu0
        %v560 = vadd.f32 0.0, %v559
        %v561 = vpop.f32.mrf.mxu0
        %v562 = vadd.f32 0.0, %v561
        %563 = vmatmul.bf16.gmra.mxu0 %v443
        %v564 = vpop.f32.mrf.mxu0
        %v565 = vadd.f32 0.0, %v564
        %v566 = vpop.f32.mrf.mxu0
        %v567 = vadd.f32 0.0, %v566
        %568 = vmatmul.bf16.gmra.mxu0 %v446
        %v569 = vpop.f32.mrf.mxu0
        %v570 = vadd.f32 0.0, %v569
        %v571 = vpop.f32.mrf.mxu0
        %v572 = vadd.f32 0.0, %v571
        %573 = vmatmul.bf16.gmra.mxu0 %v449
        %v574 = vpop.f32.mrf.mxu0
        %v575 = vadd.f32 0.0, %v574
        %v576 = vpop.f32.mrf.mxu0
        %v577 = vadd.f32 0.0, %v576
        %578 = vmatmul.bf16.gmra.mxu0 %v452
        %v579 = vpop.f32.mrf.mxu0
        %v580 = vadd.f32 0.0, %v579
        %v581 = vpop.f32.mrf.mxu0
        %v582 = vadd.f32 0.0, %v581
        %583 = vmatmul.bf16.gmra.mxu0 %v455
        %v584 = vpop.f32.mrf.mxu0
        %v585 = vadd.f32 0.0, %v584
        %v586 = vpop.f32.mrf.mxu0
        %v587 = vadd.f32 0.0, %v586
        %588 = vmatmul.bf16.gmra.mxu0 %v458
        %v589 = vpop.f32.mrf.mxu0
        %v590 = vadd.f32 0.0, %v589
        %v591 = vpop.f32.mrf.mxu0
        %v592 = vadd.f32 0.0, %v591
        %593 = vmatmul.bf16.gmra.mxu0 %v461
        %v594 = vpop.f32.mrf.mxu0
        %v595 = vadd.f32 0.0, %v594
        %v596 = vpop.f32.mrf.mxu0
        %v597 = vadd.f32 0.0, %v596
        %598 = vdwg.mxu0
        %599 = vmatpush.bf16.msra.mxu0 0
        %600 = vmatpush.bf16.msra.mxu0 0
        %601 = vmatpush.bf16.msra.mxu0 0
        %602 = vmatpush.bf16.msra.mxu0 0
        %603 = vmatpush.bf16.msra.mxu0 0
        %604 = vmatpush.bf16.msra.mxu0 0
        %605 = vmatpush.bf16.msra.mxu0 0
        %606 = vmatpush.bf16.msra.mxu0 %v468
        %607 = vmatmul.bf16.gmra.mxu0 %v392
        %v608 = vpop.f32.mrf.mxu0
        %v609 = vadd.f32 0.0, %v608
        %v610 = vpop.f32.mrf.mxu0
        %v611 = vadd.f32 0.0, %v610
        %612 = vmatmul.bf16.gmra.mxu0 %v395
        %v613 = vpop.f32.mrf.mxu0
        %v614 = vadd.f32 0.0, %v613
        %v615 = vpop.f32.mrf.mxu0
        %v616 = vadd.f32 0.0, %v615
        %617 = vmatmul.bf16.gmra.mxu0 %v398
        %v618 = vpop.f32.mrf.mxu0
        %v619 = vadd.f32 0.0, %v618
        %v620 = vpop.f32.mrf.mxu0
        %v621 = vadd.f32 0.0, %v620
        %622 = vmatmul.bf16.gmra.mxu0 %v401
        %v623 = vpop.f32.mrf.mxu0
        %v624 = vadd.f32 0.0, %v623
        %v625 = vpop.f32.mrf.mxu0
        %v626 = vadd.f32 0.0, %v625
        %627 = vmatmul.bf16.gmra.mxu0 %v404
        %v628 = vpop.f32.mrf.mxu0
        %v629 = vadd.f32 0.0, %v628
        %v630 = vpop.f32.mrf.mxu0
        %v631 = vadd.f32 0.0, %v630
        %632 = vmatmul.bf16.gmra.mxu0 %v407
        %v633 = vpop.f32.mrf.mxu0
        %v634 = vadd.f32 0.0, %v633
        %v635 = vpop.f32.mrf.mxu0
        %v636 = vadd.f32 0.0, %v635
        %637 = vmatmul.bf16.gmra.mxu0 %v410
        %v638 = vpop.f32.mrf.mxu0
        %v639 = vadd.f32 0.0, %v638
        %v640 = vpop.f32.mrf.mxu0
        %v641 = vadd.f32 0.0, %v640
        %642 = vmatmul.bf16.gmra.mxu0 %v413
        %v643 = vpop.f32.mrf.mxu0
        %v644 = vadd.f32 0.0, %v643
        %v645 = vpop.f32.mrf.mxu0
        %v646 = vadd.f32 0.0, %v645
        %647 = vmatmul.bf16.gmra.mxu0 %v416
        %v648 = vpop.f32.mrf.mxu0
        %v649 = vadd.f32 0.0, %v648
        %v650 = vpop.f32.mrf.mxu0
        %v651 = vadd.f32 0.0, %v650
        %652 = vmatmul.bf16.gmra.mxu0 %v419
        %v653 = vpop.f32.mrf.mxu0
        %v654 = vadd.f32 0.0, %v653
        %v655 = vpop.f32.mrf.mxu0
        %v656 = vadd.f32 0.0, %v655
        %657 = vmatmul.bf16.gmra.mxu0 %v422
        %v658 = vpop.f32.mrf.mxu0
        %v659 = vadd.f32 0.0, %v658
        %v660 = vpop.f32.mrf.mxu0
        %v661 = vadd.f32 0.0, %v660
        %662 = vmatmul.bf16.gmra.mxu0 %v425
        %v663 = vpop.f32.mrf.mxu0
        %v664 = vadd.f32 0.0, %v663
        %v665 = vpop.f32.mrf.mxu0
        %v666 = vadd.f32 0.0, %v665
        %667 = vmatmul.bf16.gmra.mxu0 %v428
        %v668 = vpop.f32.mrf.mxu0
        %v669 = vadd.f32 0.0, %v668
        %v670 = vpop.f32.mrf.mxu0
        %v671 = vadd.f32 0.0, %v670
        %672 = vmatmul.bf16.gmra.mxu0 %v431
        %v673 = vpop.f32.mrf.mxu0
        %v674 = vadd.f32 0.0, %v673
        %v675 = vpop.f32.mrf.mxu0
        %v676 = vadd.f32 0.0, %v675
        %677 = vmatmul.bf16.gmra.mxu0 %v434
        %v678 = vpop.f32.mrf.mxu0
        %v679 = vadd.f32 0.0, %v678
        %v680 = vpop.f32.mrf.mxu0
        %v681 = vadd.f32 0.0, %v680
        %682 = vmatmul.bf16.gmra.mxu0 %v437
        %v683 = vpop.f32.mrf.mxu0
        %v684 = vadd.f32 0.0, %v683
        %v685 = vpop.f32.mrf.mxu0
        %v686 = vadd.f32 0.0, %v685
        %687 = vmatmul.bf16.gmra.mxu0 %v440
        %v688 = vpop.f32.mrf.mxu0
        %v689 = vadd.f32 0.0, %v688
        %v690 = vpop.f32.mrf.mxu0
        %v691 = vadd.f32 0.0, %v690
        %692 = vmatmul.bf16.gmra.mxu0 %v443
        %v693 = vpop.f32.mrf.mxu0
        %v694 = vadd.f32 0.0, %v693
        %v695 = vpop.f32.mrf.mxu0
        %v696 = vadd.f32 0.0, %v695
        %697 = vmatmul.bf16.gmra.mxu0 %v446
        %v698 = vpop.f32.mrf.mxu0
        %v699 = vadd.f32 0.0, %v698
        %v700 = vpop.f32.mrf.mxu0
        %v701 = vadd.f32 0.0, %v700
        %702 = vmatmul.bf16.gmra.mxu0 %v449
        %v703 = vpop.f32.mrf.mxu0
        %v704 = vadd.f32 0.0, %v703
        %v705 = vpop.f32.mrf.mxu0
        %v706 = vadd.f32 0.0, %v705
        %707 = vmatmul.bf16.gmra.mxu0 %v452
        %v708 = vpop.f32.mrf.mxu0
        %v709 = vadd.f32 0.0, %v708
        %v710 = vpop.f32.mrf.mxu0
        %v711 = vadd.f32 0.0, %v710
        %712 = vmatmul.bf16.gmra.mxu0 %v455
        %v713 = vpop.f32.mrf.mxu0
        %v714 = vadd.f32 0.0, %v713
        %v715 = vpop.f32.mrf.mxu0
        %v716 = vadd.f32 0.0, %v715
        %717 = vmatmul.bf16.gmra.mxu0 %v458
        %v718 = vpop.f32.mrf.mxu0
        %v719 = vadd.f32 0.0, %v718
        %v720 = vpop.f32.mrf.mxu0
        %v721 = vadd.f32 0.0, %v720
        %722 = vmatmul.bf16.gmra.mxu0 %v461
        %v723 = vpop.f32.mrf.mxu0
        %v724 = vadd.f32 0.0, %v723
        %v725 = vpop.f32.mrf.mxu0
        %v726 = vadd.f32 0.0, %v725
        %727 = vdwg.mxu0
        %v728 = vpack.c.bf16 %v609, %v480
        %v729 = vpack.c.bf16 %v611, %v482
        %v730 = vpack.c.bf16 %v614, %v485
        %v731 = vpack.c.bf16 %v616, %v487
        %v732 = vpack.c.bf16 %v619, %v490
        %v733 = vpack.c.bf16 %v621, %v492
        %v734 = vpack.c.bf16 %v624, %v495
        %v735 = vpack.c.bf16 %v626, %v497
        %v736 = vpack.c.bf16 %v629, %v500
        %v737 = vpack.c.bf16 %v631, %v502
        %v738 = vpack.c.bf16 %v634, %v505
        %v739 = vpack.c.bf16 %v636, %v507
        %v740 = vpack.c.bf16 %v639, %v510
        %v741 = vpack.c.bf16 %v641, %v512
        %v742 = vpack.c.bf16 %v644, %v515
        %v743 = vpack.c.bf16 %v646, %v517
        %v744 = vpack.c.bf16 %v649, %v520
        %v745 = vpack.c.bf16 %v651, %v522
        %v746 = vpack.c.bf16 %v654, %v525
        %v747 = vpack.c.bf16 %v656, %v527
        %v748 = vpack.c.bf16 %v659, %v530
        %v749 = vpack.c.bf16 %v661, %v532
        %v750 = vpack.c.bf16 %v664, %v535
        %v751 = vpack.c.bf16 %v666, %v537
        %v752 = vpack.c.bf16 %v669, %v540
        %v753 = vpack.c.bf16 %v671, %v542
        %v754 = vpack.c.bf16 %v674, %v545
        %v755 = vpack.c.bf16 %v676, %v547
        %v756 = vpack.c.bf16 %v679, %v550
        %v757 = vpack.c.bf16 %v681, %v552
        %v758 = vpack.c.bf16 %v684, %v555
        %v759 = vpack.c.bf16 %v686, %v557
        %v760 = vpack.c.bf16 %v689, %v560
        %v761 = vpack.c.bf16 %v691, %v562
        %v762 = vpack.c.bf16 %v694, %v565
        %v763 = vpack.c.bf16 %v696, %v567
        %v764 = vpack.c.bf16 %v699, %v570
        %v765 = vpack.c.bf16 %v701, %v572
        %v766 = vpack.c.bf16 %v704, %v575
        %v767 = vpack.c.bf16 %v706, %v577
        %v768 = vpack.c.bf16 %v709, %v580
        %v769 = vpack.c.bf16 %v711, %v582
        %v770 = vpack.c.bf16 %v714, %v585
        %v771 = vpack.c.bf16 %v716, %v587
        %v772 = vpack.c.bf16 %v719, %v590
        %v773 = vpack.c.bf16 %v721, %v592
        %v774 = vpack.c.bf16 %v724, %v595
        %v775 = vpack.c.bf16 %v726, %v597
        %776 = vst [vmem:[#allocation2] sm:$0xff] %v728
        %777 = vst [vmem:[#allocation2 + $0x8] sm:$0xff] %v729
        %778 = vst [vmem:[#allocation2 + $0x10] sm:$0xff] %v730
        %779 = vst [vmem:[#allocation2 + $0x18] sm:$0xff] %v731
        %780 = vst [vmem:[#allocation2 + $0x20] sm:$0xff] %v732
        %781 = vst [vmem:[#allocation2 + $0x28] sm:$0xff] %v733
        %782 = vst [vmem:[#allocation2 + $0x30] sm:$0xff] %v734
        %783 = vst [vmem:[#allocation2 + $0x38] sm:$0xff] %v735
        %784 = vst [vmem:[#allocation2 + $0x40] sm:$0xff] %v736
        %785 = vst [vmem:[#allocation2 + $0x48] sm:$0xff] %v737
        %786 = vst [vmem:[#allocation2 + $0x50] sm:$0xff] %v738
        %787 = vst [vmem:[#allocation2 + $0x58] sm:$0xff] %v739
        %788 = vst [vmem:[#allocation2 + $0x60] sm:$0xff] %v740
        %789 = vst [vmem:[#allocation2 + $0x68] sm:$0xff] %v741
        %790 = vst [vmem:[#allocation2 + $0x70] sm:$0xff] %v742
        %791 = vst [vmem:[#allocation2 + $0x78] sm:$0xff] %v743
        %792 = vst [vmem:[#allocation2 + $0x80] sm:$0xff] %v744
        %793 = vst [vmem:[#allocation2 + $0x88] sm:$0xff] %v745
        %794 = vst [vmem:[#allocation2 + $0x90] sm:$0xff] %v746
        %795 = vst [vmem:[#allocation2 + $0x98] sm:$0xff] %v747
        %796 = vst [vmem:[#allocation2 + $0xa0] sm:$0xff] %v748
        %797 = vst [vmem:[#allocation2 + $0xa8] sm:$0xff] %v749
        %798 = vst [vmem:[#allocation2 + $0xb0] sm:$0xff] %v750
        %799 = vst [vmem:[#allocation2 + $0xb8] sm:$0xff] %v751
        %800 = vst [vmem:[#allocation2 + $0xc0] sm:$0xff] %v752
        %801 = vst [vmem:[#allocation2 + $0xc8] sm:$0xff] %v753
        %802 = vst [vmem:[#allocation2 + $0xd0] sm:$0xff] %v754
        %803 = vst [vmem:[#allocation2 + $0xd8] sm:$0xff] %v755
        %804 = vst [vmem:[#allocation2 + $0xe0] sm:$0xff] %v756
        %805 = vst [vmem:[#allocation2 + $0xe8] sm:$0xff] %v757
        %806 = vst [vmem:[#allocation2 + $0xf0] sm:$0xff] %v758
        %807 = vst [vmem:[#allocation2 + $0xf8] sm:$0xff] %v759
        %808 = vst [vmem:[#allocation2 + $0x100] sm:$0xff] %v760
        %809 = vst [vmem:[#allocation2 + $0x108] sm:$0xff] %v761
        %810 = vst [vmem:[#allocation2 + $0x110] sm:$0xff] %v762
        %811 = vst [vmem:[#allocation2 + $0x118] sm:$0xff] %v763
        %812 = vst [vmem:[#allocation2 + $0x120] sm:$0xff] %v764
        %813 = vst [vmem:[#allocation2 + $0x128] sm:$0xff] %v765
        %814 = vst [vmem:[#allocation2 + $0x130] sm:$0xff] %v766
        %815 = vst [vmem:[#allocation2 + $0x138] sm:$0xff] %v767
        %816 = vst [vmem:[#allocation2 + $0x140] sm:$0xff] %v768
        %817 = vst [vmem:[#allocation2 + $0x148] sm:$0xff] %v769
        %818 = vst [vmem:[#allocation2 + $0x150] sm:$0xff] %v770
        %819 = vst [vmem:[#allocation2 + $0x158] sm:$0xff] %v771
        %820 = vst [vmem:[#allocation2 + $0x160] sm:$0xff] %v772
        %821 = vst [vmem:[#allocation2 + $0x168] sm:$0xff] %v773
        %822 = vst [vmem:[#allocation2 + $0x170] sm:$0xff] %v774
        %823 = vst [vmem:[#allocation2 + $0x178] sm:$0xff] %v775
        loop: start=0, step=1, limit=4
        $region37: #{tpu_custom_call.1} parent=35 // loop_pre_header
          _
        $region38: #{tpu_custom_call.1} parent=35 // loop_header
          %s825 = sphi 0, %s829
          %p826 = scmp.ge.s32.totalorder %s825, 4
        $region39: #{tpu_custom_call.1} parent=35 // loop_header_branch
          %828 = sbr.rel (%p826) target = $region43
        $region40: #{tpu_custom_call.1} parent=35 // loop_body
          %s830 = smul.u32 %s825, 32
          %s831 = sadd.s32 %s830, 128
          %s832 = sadd.s32 %s830, 256
          %s833 = sshra.s32 %s212, 7
          %s834 = sand.u32 %s212, 127
          %s835 = sshra.s32 %s830, 3
          %s836 = sand.u32 %s830, 7
          %s837 = smul.u32 %s835, 2
          %s838 = sadd.s32 %s833, %s837
          %s839 = smul.addr %s838, 4
          %s840 = scalar_lea.vmem [#allocation2], %s839
          %v841 = vld [vmem:[%s840] sm:$0xf]
          %v842 = vld [vmem:[%s840 + $0x8] sm:$0xf]
          %v843 = vld [vmem:[%s840 + $0x10] sm:$0xf]
          %v844 = vld [vmem:[%s840 + $0x18] sm:$0xf]
          %s845 = sshra.s32 %s831, 3
          %s846 = sand.u32 %s831, 7
          %s847 = smul.u32 %s845, 2
          %s848 = smul.addr %s847, 4
          %s849 = scalar_lea.vmem [#allocation2], %s848
          %v850 = vld [vmem:[%s849] sm:$0xff]
          %v851 = vld [vmem:[%s849 + $0x8] sm:$0xff]
          %v852 = vld [vmem:[%s849 + $0x10] sm:$0xff]
          %v853 = vld [vmem:[%s849 + $0x18] sm:$0xff]
          %s854 = sshra.s32 %s832, 3
          %s855 = sand.u32 %s832, 7
          %s856 = smul.u32 %s854, 2
          %s857 = smul.addr %s856, 4
          %s858 = scalar_lea.vmem [#allocation2], %s857
          %v859 = vld [vmem:[%s858] sm:$0xff]
          %v860 = vld [vmem:[%s858 + $0x8] sm:$0xff]
          %v861 = vld [vmem:[%s858 + $0x10] sm:$0xff]
          %v862 = vld [vmem:[%s858 + $0x18] sm:$0xff]
          %v867 = vunpack.c.l.b16 %v850
          %v868 = vunpack.c.h.b16 %v850
          %v869 = vunpack.c.l.b16 %v851
          %v870 = vunpack.c.h.b16 %v851
          %v871 = vunpack.c.l.b16 %v852
          %v872 = vunpack.c.h.b16 %v852
          %v873 = vunpack.c.l.b16 %v853
          %v874 = vunpack.c.h.b16 %v853
          %v875 = vpack.c.b16 %v869, %v867
          %v876 = vpack.c.b16 %v870, %v868
          %v877 = vpack.c.b16 %v873, %v871
          %v878 = vpack.c.b16 %v874, %v872
          %883 = vxpose.binary.xlu0.c.b16.start [1/16] %v876, %v875, 128
          %884 = vxpose.binary.xlu0.c.b16.cont [2/16] %v878, %v877, 128
          %885 = vxpose.binary.xlu0.c.b16.cont [3/16] 0, 0, 128
          %886 = vxpose.binary.xlu0.c.b16.cont [4/16] 0, 0, 128
          %887 = vxpose.binary.xlu0.c.b16.cont [5/16] 0, 0, 128
          %888 = vxpose.binary.xlu0.c.b16.cont [6/16] 0, 0, 128
          %889 = vxpose.binary.xlu0.c.b16.cont [7/16] 0, 0, 128
          %890 = vxpose.binary.xlu0.c.b16.end [8/16] 0, 0, 128
          %v891 = vpop.trf.xlu0
          %v892 = vpop.trf.xlu0
          %v893 = vpop.trf.xlu0
          %v894 = vpop.trf.xlu0
          %v895 = vpop.trf.xlu0
          %v896 = vpop.trf.xlu0
          %v897 = vpop.trf.xlu0
          %v898 = vpop.trf.xlu0
          %v899 = vpop.trf.xlu0
          %v900 = vpop.trf.xlu0
          %v901 = vpop.trf.xlu0
          %v902 = vpop.trf.xlu0
          %v903 = vpop.trf.xlu0
          %v904 = vpop.trf.xlu0
          %v905 = vpop.trf.xlu0
          %v906 = vpop.trf.xlu0
          %v911 = vunpack.c.l.b16 %v841
          %v912 = vunpack.c.l.b16 %v842
          %v913 = vunpack.c.l.b16 %v843
          %v914 = vunpack.c.l.b16 %v844
          %v915 = vpack.c.b16 %v912, %v911
          %v916 = vpack.c.b16 %v914, %v913
          %vm919 = vcmask 261120
          %v921 = vsel %vm919, %v891, 0
          %v924 = vsel %vm919, %v893, 0
          %v927 = vsel %vm919, %v895, 0
          %v930 = vsel %vm919, %v897, 0
          %v933 = vsel %vm919, %v899, 0
          %v936 = vsel %vm919, %v901, 0
          %v939 = vsel %vm919, %v903, 0
          %v942 = vsel %vm919, %v905, 0
          %v945 = vsel %vm919, %v892, 0
          %v948 = vsel %vm919, %v894, 0
          %v951 = vsel %vm919, %v896, 0
          %v954 = vsel %vm919, %v898, 0
          %v957 = vsel %vm919, %v900, 0
          %v960 = vsel %vm919, %v902, 0
          %v963 = vsel %vm919, %v904, 0
          %v966 = vsel %vm919, %v906, 0
          %968 = vmatpush.bf16.msra.mxu0 0
          %969 = vmatpush.bf16.msra.mxu0 0
          %970 = vmatpush.bf16.msra.mxu0 0
          %971 = vmatpush.bf16.msra.mxu0 0
          %972 = vmatpush.bf16.msra.mxu0 0
          %973 = vmatpush.bf16.msra.mxu0 0
          %974 = vmatpush.bf16.msra.mxu0 %v916
          %975 = vmatpush.bf16.msra.mxu0 %v915
          %976 = vmatmul.bf16.gmra.mxu0 %v921
          %v977 = vpop.f32.mrf.mxu0
          %v978 = vadd.f32 0.0, %v977
          %v979 = vpop.f32.mrf.mxu0
          %v980 = vadd.f32 0.0, %v979
          %981 = vmatmul.bf16.gmra.mxu0 %v924
          %v982 = vpop.f32.mrf.mxu0
          %v983 = vadd.f32 0.0, %v982
          %v984 = vpop.f32.mrf.mxu0
          %v985 = vadd.f32 0.0, %v984
          %986 = vmatmul.bf16.gmra.mxu0 %v927
          %v987 = vpop.f32.mrf.mxu0
          %v988 = vadd.f32 0.0, %v987
          %v989 = vpop.f32.mrf.mxu0
          %v990 = vadd.f32 0.0, %v989
          %991 = vmatmul.bf16.gmra.mxu0 %v930
          %v992 = vpop.f32.mrf.mxu0
          %v993 = vadd.f32 0.0, %v992
          %v994 = vpop.f32.mrf.mxu0
          %v995 = vadd.f32 0.0, %v994
          %996 = vmatmul.bf16.gmra.mxu0 %v933
          %v997 = vpop.f32.mrf.mxu0
          %v998 = vadd.f32 0.0, %v997
          %v999 = vpop.f32.mrf.mxu0
          %v1000 = vadd.f32 0.0, %v999
          %1001 = vmatmul.bf16.gmra.mxu0 %v936
          %v1002 = vpop.f32.mrf.mxu0
          %v1003 = vadd.f32 0.0, %v1002
          %v1004 = vpop.f32.mrf.mxu0
          %v1005 = vadd.f32 0.0, %v1004
          %1006 = vmatmul.bf16.gmra.mxu0 %v939
          %v1007 = vpop.f32.mrf.mxu0
          %v1008 = vadd.f32 0.0, %v1007
          %v1009 = vpop.f32.mrf.mxu0
          %v1010 = vadd.f32 0.0, %v1009
          %1011 = vmatmul.bf16.gmra.mxu0 %v942
          %v1012 = vpop.f32.mrf.mxu0
          %v1013 = vadd.f32 0.0, %v1012
          %v1014 = vpop.f32.mrf.mxu0
          %v1015 = vadd.f32 0.0, %v1014
          %1016 = vmatmul.bf16.gmra.mxu0 %v945
          %v1017 = vpop.f32.mrf.mxu0
          %v1018 = vadd.f32 0.0, %v1017
          %v1019 = vpop.f32.mrf.mxu0
          %v1020 = vadd.f32 0.0, %v1019
          %1021 = vmatmul.bf16.gmra.mxu0 %v948
          %v1022 = vpop.f32.mrf.mxu0
          %v1023 = vadd.f32 0.0, %v1022
          %v1024 = vpop.f32.mrf.mxu0
          %v1025 = vadd.f32 0.0, %v1024
          %1026 = vmatmul.bf16.gmra.mxu0 %v951
          %v1027 = vpop.f32.mrf.mxu0
          %v1028 = vadd.f32 0.0, %v1027
          %v1029 = vpop.f32.mrf.mxu0
          %v1030 = vadd.f32 0.0, %v1029
          %1031 = vmatmul.bf16.gmra.mxu0 %v954
          %v1032 = vpop.f32.mrf.mxu0
          %v1033 = vadd.f32 0.0, %v1032
          %v1034 = vpop.f32.mrf.mxu0
          %v1035 = vadd.f32 0.0, %v1034
          %1036 = vmatmul.bf16.gmra.mxu0 %v957
          %v1037 = vpop.f32.mrf.mxu0
          %v1038 = vadd.f32 0.0, %v1037
          %v1039 = vpop.f32.mrf.mxu0
          %v1040 = vadd.f32 0.0, %v1039
          %1041 = vmatmul.bf16.gmra.mxu0 %v960
          %v1042 = vpop.f32.mrf.mxu0
          %v1043 = vadd.f32 0.0, %v1042
          %v1044 = vpop.f32.mrf.mxu0
          %v1045 = vadd.f32 0.0, %v1044
          %1046 = vmatmul.bf16.gmra.mxu0 %v963
          %v1047 = vpop.f32.mrf.mxu0
          %v1048 = vadd.f32 0.0, %v1047
          %v1049 = vpop.f32.mrf.mxu0
          %v1050 = vadd.f32 0.0, %v1049
          %1051 = vmatmul.bf16.gmra.mxu0 %v966
          %v1052 = vpop.f32.mrf.mxu0
          %v1053 = vadd.f32 0.0, %v1052
          %v1054 = vpop.f32.mrf.mxu0
          %v1055 = vadd.f32 0.0, %v1054
          %1056 = vdwg.mxu0
          %v1057 = vmax.f32 %v978, %v988
          %v1058 = vmax.f32 %v980, %v990
          %v1059 = vmax.f32 %v983, %v993
          %v1060 = vmax.f32 %v985, %v995
          %v1061 = vmax.f32 %v1057, %v998
          %v1062 = vmax.f32 %v1058, %v1000
          %v1063 = vmax.f32 %v1059, %v1003
          %v1064 = vmax.f32 %v1060, %v1005
          %v1065 = vmax.f32 %v1061, %v1008
          %v1066 = vmax.f32 %v1062, %v1010
          %v1067 = vmax.f32 %v1063, %v1013
          %v1068 = vmax.f32 %v1064, %v1015
          %v1069 = vmax.f32 %v1065, %v1018
          %v1070 = vmax.f32 %v1066, %v1020
          %v1071 = vmax.f32 %v1067, %v1023
          %v1072 = vmax.f32 %v1068, %v1025
          %v1073 = vmax.f32 %v1069, %v1028
          %v1074 = vmax.f32 %v1070, %v1030
          %v1075 = vmax.f32 %v1071, %v1033
          %v1076 = vmax.f32 %v1072, %v1035
          %v1077 = vmax.f32 %v1073, %v1038
          %v1078 = vmax.f32 %v1074, %v1040
          %v1079 = vmax.f32 %v1075, %v1043
          %v1080 = vmax.f32 %v1076, %v1045
          %v1081 = vmax.f32 %v1077, %v1048
          %v1082 = vmax.f32 %v1078, %v1050
          %v1083 = vmax.f32 %v1079, %v1053
          %v1084 = vmax.f32 %v1080, %v1055
          %v1085 = vmax.f32 %v1081, %v1082
          %v1086 = vmax.f32 %v1083, %v1084
          %v1087 = vmax.f32 %v1085, %v1086
          %v1088 = vrot.slane %v1087, 4
          %v1089 = vmax.f32 %v1087, %v1088
          %v1090 = vrot.slane %v1089, 2
          %v1091 = vmax.f32 %v1089, %v1090
          %v1092 = vrot.slane %v1091, 1
          %v1093 = vmax.f32 %v1091, %v1092
          %v1094 = vsub.f32 %v978, %v1093
          %v1095 = vsub.f32 %v980, %v1093
          %v1096 = vsub.f32 %v983, %v1093
          %v1097 = vsub.f32 %v985, %v1093
          %v1098 = vsub.f32 %v988, %v1093
          %v1099 = vsub.f32 %v990, %v1093
          %v1100 = vsub.f32 %v993, %v1093
          %v1101 = vsub.f32 %v995, %v1093
          %v1102 = vsub.f32 %v998, %v1093
          %v1103 = vsub.f32 %v1000, %v1093
          %v1104 = vsub.f32 %v1003, %v1093
          %v1105 = vsub.f32 %v1005, %v1093
          %v1106 = vsub.f32 %v1008, %v1093
          %v1107 = vsub.f32 %v1010, %v1093
          %v1108 = vsub.f32 %v1013, %v1093
          %v1109 = vsub.f32 %v1015, %v1093
          %v1110 = vsub.f32 %v1018, %v1093
          %v1111 = vsub.f32 %v1020, %v1093
          %v1112 = vsub.f32 %v1023, %v1093
          %v1113 = vsub.f32 %v1025, %v1093
          %v1114 = vsub.f32 %v1028, %v1093
          %v1115 = vsub.f32 %v1030, %v1093
          %v1116 = vsub.f32 %v1033, %v1093
          %v1117 = vsub.f32 %v1035, %v1093
          %v1118 = vsub.f32 %v1038, %v1093
          %v1119 = vsub.f32 %v1040, %v1093
          %v1120 = vsub.f32 %v1043, %v1093
          %v1121 = vsub.f32 %v1045, %v1093
          %v1122 = vsub.f32 %v1048, %v1093
          %v1123 = vsub.f32 %v1050, %v1093
          %v1124 = vsub.f32 %v1053, %v1093
          %v1125 = vsub.f32 %v1055, %v1093
          %v1126 = vmul.f32 %v1094, 1.442695
          %v1127 = vpow.pop %v1126
          %v1128 = vmul.f32 %v1095, 1.442695
          %v1129 = vpow.pop %v1128
          %v1130 = vmul.f32 %v1096, 1.442695
          %v1131 = vpow.pop %v1130
          %v1132 = vmul.f32 %v1097, 1.442695
          %v1133 = vpow.pop %v1132
          %v1134 = vmul.f32 %v1098, 1.442695
          %v1135 = vpow.pop %v1134
          %v1136 = vmul.f32 %v1099, 1.442695
          %v1137 = vpow.pop %v1136
          %v1138 = vmul.f32 %v1100, 1.442695
          %v1139 = vpow.pop %v1138
          %v1140 = vmul.f32 %v1101, 1.442695
          %v1141 = vpow.pop %v1140
          %v1142 = vmul.f32 %v1102, 1.442695
          %v1143 = vpow.pop %v1142
          %v1144 = vmul.f32 %v1103, 1.442695
          %v1145 = vpow.pop %v1144
          %v1146 = vmul.f32 %v1104, 1.442695
          %v1147 = vpow.pop %v1146
          %v1148 = vmul.f32 %v1105, 1.442695
          %v1149 = vpow.pop %v1148
          %v1150 = vmul.f32 %v1106, 1.442695
          %v1151 = vpow.pop %v1150
          %v1152 = vmul.f32 %v1107, 1.442695
          %v1153 = vpow.pop %v1152
          %v1154 = vmul.f32 %v1108, 1.442695
          %v1155 = vpow.pop %v1154
          %v1156 = vmul.f32 %v1109, 1.442695
          %v1157 = vpow.pop %v1156
          %v1158 = vmul.f32 %v1110, 1.442695
          %v1159 = vpow.pop %v1158
          %v1160 = vmul.f32 %v1111, 1.442695
          %v1161 = vpow.pop %v1160
          %v1162 = vmul.f32 %v1112, 1.442695
          %v1163 = vpow.pop %v1162
          %v1164 = vmul.f32 %v1113, 1.442695
          %v1165 = vpow.pop %v1164
          %v1166 = vmul.f32 %v1114, 1.442695
          %v1167 = vpow.pop %v1166
          %v1168 = vmul.f32 %v1115, 1.442695
          %v1169 = vpow.pop %v1168
          %v1170 = vmul.f32 %v1116, 1.442695
          %v1171 = vpow.pop %v1170
          %v1172 = vmul.f32 %v1117, 1.442695
          %v1173 = vpow.pop %v1172
          %v1174 = vmul.f32 %v1118, 1.442695
          %v1175 = vpow.pop %v1174
          %v1176 = vmul.f32 %v1119, 1.442695
          %v1177 = vpow.pop %v1176
          %v1178 = vmul.f32 %v1120, 1.442695
          %v1179 = vpow.pop %v1178
          %v1180 = vmul.f32 %v1121, 1.442695
          %v1181 = vpow.pop %v1180
          %v1182 = vmul.f32 %v1122, 1.442695
          %v1183 = vpow.pop %v1182
          %v1184 = vmul.f32 %v1123, 1.442695
          %v1185 = vpow.pop %v1184
          %v1186 = vmul.f32 %v1124, 1.442695
          %v1187 = vpow.pop %v1186
          %v1188 = vmul.f32 %v1125, 1.442695
          %v1189 = vpow.pop %v1188
          %v1190 = vpack.c.bf16 %v1129, %v1127
          %v1191 = vpack.c.bf16 %v1133, %v1131
          %v1192 = vpack.c.bf16 %v1137, %v1135
          %v1193 = vpack.c.bf16 %v1141, %v1139
          %v1194 = vpack.c.bf16 %v1145, %v1143
          %v1195 = vpack.c.bf16 %v1149, %v1147
          %v1196 = vpack.c.bf16 %v1153, %v1151
          %v1197 = vpack.c.bf16 %v1157, %v1155
          %v1198 = vpack.c.bf16 %v1161, %v1159
          %v1199 = vpack.c.bf16 %v1165, %v1163
          %v1200 = vpack.c.bf16 %v1169, %v1167
          %v1201 = vpack.c.bf16 %v1173, %v1171
          %v1202 = vpack.c.bf16 %v1177, %v1175
          %v1203 = vpack.c.bf16 %v1181, %v1179
          %v1204 = vpack.c.bf16 %v1185, %v1183
          %v1205 = vpack.c.bf16 %v1189, %v1187
          %v1210 = vunpack.c.l.b16 %v859
          %v1211 = vunpack.c.h.b16 %v859
          %v1212 = vunpack.c.l.b16 %v860
          %v1213 = vunpack.c.h.b16 %v860
          %v1214 = vunpack.c.l.b16 %v861
          %v1215 = vunpack.c.h.b16 %v861
          %v1216 = vunpack.c.l.b16 %v862
          %v1217 = vunpack.c.h.b16 %v862
          %v1218 = vpack.c.b16 %v1212, %v1210
          %v1219 = vpack.c.b16 %v1213, %v1211
          %v1220 = vpack.c.b16 %v1216, %v1214
          %v1221 = vpack.c.b16 %v1217, %v1215
          %1226 = vmatpush.bf16.msra.mxu0 %v1197
          %1227 = vmatpush.bf16.msra.mxu0 %v1196
          %1228 = vmatpush.bf16.msra.mxu0 %v1195
          %1229 = vmatpush.bf16.msra.mxu0 %v1194
          %1230 = vmatpush.bf16.msra.mxu0 %v1193
          %1231 = vmatpush.bf16.msra.mxu0 %v1192
          %1232 = vmatpush.bf16.msra.mxu0 %v1191
          %1233 = vmatpush.bf16.msra.mxu0 %v1190
          %1234 = vmatmul.bf16.gmra.mxu0 %v1218
          %v1235 = vpop.f32.mrf.mxu0
          %v1236 = vadd.f32 0.0, %v1235
          %v1237 = vpop.f32.mrf.mxu0
          %v1238 = vadd.f32 0.0, %v1237
          %1239 = vmatmul.bf16.gmra.mxu0 %v1220
          %v1240 = vpop.f32.mrf.mxu0
          %v1241 = vadd.f32 0.0, %v1240
          %v1242 = vpop.f32.mrf.mxu0
          %v1243 = vadd.f32 0.0, %v1242
          %1244 = vmatmul.bf16.gmra.mxu0 1065369472
          %v1245 = vpop.f32.mrf.mxu0
          %v1246 = vadd.f32 0.0, %v1245
          %v1247 = vpop.f32.mrf.mxu0
          %1248 = vdwg.mxu0
          %1249 = vmatpush.bf16.msra.mxu0 %v1205
          %1250 = vmatpush.bf16.msra.mxu0 %v1204
          %1251 = vmatpush.bf16.msra.mxu0 %v1203
          %1252 = vmatpush.bf16.msra.mxu0 %v1202
          %1253 = vmatpush.bf16.msra.mxu0 %v1201
          %1254 = vmatpush.bf16.msra.mxu0 %v1200
          %1255 = vmatpush.bf16.msra.mxu0 %v1199
          %1256 = vmatpush.bf16.msra.mxu0 %v1198
          %1257 = vmatmul.bf16.gmra.mxu0 %v1219
          %v1258 = vpop.f32.mrf.mxu0
          %v1259 = vadd.f32 %v1236, %v1258
          %v1260 = vpop.f32.mrf.mxu0
          %v1261 = vadd.f32 %v1238, %v1260
          %1262 = vmatmul.bf16.gmra.mxu0 %v1221
          %v1263 = vpop.f32.mrf.mxu0
          %v1264 = vadd.f32 %v1241, %v1263
          %v1265 = vpop.f32.mrf.mxu0
          %v1266 = vadd.f32 %v1243, %v1265
          %1267 = vmatmul.bf16.gmra.mxu0 1065369472
          %v1268 = vpop.f32.mrf.mxu0
          %v1269 = vadd.f32 %v1246, %v1268
          %v1270 = vpop.f32.mrf.mxu0
          %1271 = vdwg.mxu0
          %v1272 = vrcp.pop %v1269
          %v1273 = vmul.f32 %v1269, %v1272
          %v1274 = vsub.f32 1.0, %v1273
          %v1275 = vmul.f32 %v1272, %v1274
          %v1276 = vadd.f32 %v1272, %v1275
          %vm1277 = vweird.f32 %v1269
          %vm1278 = vweird.f32 %v1272
          %vm1279 = vmor %vm1277, %vm1278
          %v1280 = vsel %vm1279, %v1272, %v1276
          %v1281 = vand.u32 2147483647, %v1269
          %vm1282 = vcmp.eq.f32.partialorder %v1281, 8.507059e+37
          %v1283 = vand.u32 %v1269, 2147483648
          %v1284 = vor.u32 1.1754944e-38, %v1283
          %v1285 = vsel %vm1282, %v1284, %v1280
          %v1286 = vperm.slane %v1285, 0
          %v1287 = vmul.f32 %v1259, %v1286
          %v1288 = vmul.f32 %v1261, %v1286
          %v1289 = vmul.f32 %v1264, %v1286
          %v1290 = vmul.f32 %v1266, %v1286
          %v1291 = vpack.c.bf16 %v1287, %v1287
          %v1292 = vpack.c.bf16 %v1288, %v1288
          %v1293 = vpack.c.bf16 %v1289, %v1289
          %v1294 = vpack.c.bf16 %v1290, %v1290
          %s1295 = smul.addr %s835, 4
          %s1296 = scalar_lea.vmem [#allocation3], %s1295
          %1297 = vst [vmem:[%s1296] sm:$0xf] %v1291
          %1298 = vst [vmem:[%s1296 + $0x4] sm:$0xf] %v1292
          %1299 = vst [vmem:[%s1296 + $0x8] sm:$0xf] %v1293
          %1300 = vst [vmem:[%s1296 + $0xc] sm:$0xf] %v1294
        $region41: #{tpu_custom_call.1} parent=35 // loop_footer
          %s829 = sadd.s32 1, %s825
        $region42: #{tpu_custom_call.1} parent=35 // loop_footer_branch
          %824 = sbr.rel target = $region38
        $region43: #{tpu_custom_call.1} parent=35 // loop_exit
          _
        %v1301 = vld [vmem:[%s2] sm:$0x3]
        %v1302 = vld [vmem:[#allocation3] sm:$0xf]
        %v1303 = vld [vmem:[#allocation3 + $0x4] sm:$0xf]
        %v1304 = vld [vmem:[#allocation3 + $0x8] sm:$0xf]
        %v1305 = vld [vmem:[#allocation3 + $0xc] sm:$0xf]
        %v1306 = vld [vmem:[#allocation3 + $0x10] sm:$0xf]
        %v1307 = vld [vmem:[#allocation3 + $0x14] sm:$0xf]
        %v1308 = vld [vmem:[#allocation3 + $0x18] sm:$0xf]
        %v1309 = vld [vmem:[#allocation3 + $0x1c] sm:$0xf]
        %v1310 = vld [vmem:[#allocation3 + $0x20] sm:$0xf]
        %v1311 = vld [vmem:[#allocation3 + $0x24] sm:$0xf]
        %v1312 = vld [vmem:[#allocation3 + $0x28] sm:$0xf]
        %v1313 = vld [vmem:[#allocation3 + $0x2c] sm:$0xf]
        %v1314 = vld [vmem:[#allocation3 + $0x30] sm:$0xf]
        %v1315 = vld [vmem:[#allocation3 + $0x34] sm:$0xf]
        %v1316 = vld [vmem:[#allocation3 + $0x38] sm:$0xf]
        %v1317 = vld [vmem:[#allocation3 + $0x3c] sm:$0xf]
        %v1318 = vld [vmem:[%s3] sm:$0xf]
        %1320 = vset.pattern.permute.xlu0 0
        %1321 = vperm.xlu0 %1320, %v1318
        %v1322 = vpop.permute.xlu0 %1321
        %v1340 = vunpack.c.l.b16 %v1302
        %v1341 = vunpack.c.l.b16 %v1303
        %v1342 = vunpack.c.l.b16 %v1304
        %v1343 = vunpack.c.l.b16 %v1305
        %v1344 = vunpack.c.l.b16 %v1306
        %v1345 = vunpack.c.l.b16 %v1307
        %v1346 = vunpack.c.l.b16 %v1308
        %v1347 = vunpack.c.l.b16 %v1309
        %v1348 = vunpack.c.l.b16 %v1310
        %v1349 = vunpack.c.l.b16 %v1311
        %v1350 = vunpack.c.l.b16 %v1312
        %v1351 = vunpack.c.l.b16 %v1313
        %v1352 = vunpack.c.l.b16 %v1314
        %v1353 = vunpack.c.l.b16 %v1315
        %v1354 = vunpack.c.l.b16 %v1316
        %v1355 = vunpack.c.l.b16 %v1317
        %v1356 = vpack.c.b16 %v1341, %v1340
        %v1357 = vpack.c.b16 %v1343, %v1342
        %v1358 = vpack.c.b16 %v1345, %v1344
        %v1359 = vpack.c.b16 %v1347, %v1346
        %v1360 = vpack.c.b16 %v1349, %v1348
        %v1361 = vpack.c.b16 %v1351, %v1350
        %v1362 = vpack.c.b16 %v1353, %v1352
        %v1363 = vpack.c.b16 %v1355, %v1354
        %1372 = vmatpush.bf16.msra.mxu0 %v1363
        %1373 = vmatpush.bf16.msra.mxu0 %v1362
        %1374 = vmatpush.bf16.msra.mxu0 %v1361
        %1375 = vmatpush.bf16.msra.mxu0 %v1360
        %1376 = vmatpush.bf16.msra.mxu0 %v1359
        %1377 = vmatpush.bf16.msra.mxu0 %v1358
        %1378 = vmatpush.bf16.msra.mxu0 %v1357
        %1379 = vmatpush.bf16.msra.mxu0 %v1356
        %1380 = vmatmul.bf16.gmra.mxu0 %v1301
        %v1381 = vpop.f32.mrf.mxu0
        %v1382 = vadd.f32 %v1322, %v1381
        %v1383 = vpop.f32.mrf.mxu0
        %1384 = vdwg.mxu0
        %1385 = vst [vmem:[%s204] sm:$0xf] %v1382
        %s1386 = sand.u32 %s129, 1
        %s1387 = scalar_lea.sflag [#allocation5], %s1386
        %s1388 = sand.u32 %s129, 1
        %s1389 = smul.addr %s1388, 4
        %s1390 = scalar_lea.vmem [#allocation4], %s1389
        // Predicated region
        $region44: #{tpu_custom_call.1} parent=35 // pred_check
          %p1391 = pneg %p139
        $region45: #{tpu_custom_call.1} parent=35 // pred_check_branch
          %1393 = sbr.rel (%p1391) target = $region47
        $region46: #{tpu_custom_call.1} parent=35 // pred_region
          %1395 = vsyncadd %s1387, 0
          %s1396 = smul.addr %s22, 2
          %s1397 = sadd.s32 %s23, %s1396
          %s1398 = smul.addr %s1397, 4
          %s1399 = scalar_lea.hbm %s4, %s1398
          %s1401 = sshll.u32 %s1390, 4
          %s1402 = int_to_ptr.vmem [resolvable:$true] %s1401
          %s1403 = sshll.u32 %s1399, 4
          %s1404 = int_to_ptr.hbm [resolvable:$true] %s1403
          %1406 = dma.vmem_to_hbm [thread:$0]  %s1402, 64, %s1404, %s1387
        $region47: #{tpu_custom_call.1} parent=35 // pred_fallthru
          _
      $region36: #{tpu_custom_call.1} parent=5 // pred_fallthru
        _
      %p1407 = scmp.le.s32.totalorder 2, %s13
      // Predicated region
      $region48: #{tpu_custom_call.1} parent=5 // pred_check
        %p1408 = pneg %p1407
      $region49: #{tpu_custom_call.1} parent=5 // pred_check_branch
        %1410 = sbr.rel (%p1408) target = $region51
      $region50: #{tpu_custom_call.1} parent=5 // pred_region
        %s1411 = ssub.s32 %s13, 2
        // Predicated region
        $region52: #{tpu_custom_call.1} parent=50 // pred_check
          %p1412 = pneg %p145
        $region53: #{tpu_custom_call.1} parent=50 // pred_check_branch
          %1414 = sbr.rel (%p1412) target = $region55
        $region54: #{tpu_custom_call.1} parent=50 // pred_region
          %s1415 = sand.u32 %s130, 1
          %s1416 = scalar_lea.sflag [#allocation5], %s1415
          %s1417 = sand.u32 %s130, 1
          %s1418 = smul.addr %s1417, 4
          %s1419 = scalar_lea.vmem [#allocation4], %s1418
          %1421 = dma.done %s1416, 64
        $region55: #{tpu_custom_call.1} parent=50 // pred_fallthru
          _
      $region51: #{tpu_custom_call.1} parent=5 // pred_fallthru
        _
    $region6: #{tpu_custom_call.1} parent=1 // loop_footer
      %s17 = sadd.s32 1, %s13
    $region7: #{tpu_custom_call.1} parent=1 // loop_footer_branch
      %12 = sbr.rel target = $region3
    $region8: #{tpu_custom_call.1} parent=1 // loop_exit
      _
    %1422 = vsyncpa [#allocation5], 1
    %s1423 = scalar_lea.sflag [#allocation5], 1
    %1424 = vsyncpa %s1423, 1

</llo_original>
